<compile_context>
chip_gen: v7x
topology: tpu7x:2x2x1
jax: 0.10.0
libtpu: 0.0.40
codegen_flags: <defaults>
</compile_context>

<pallas_src>
import jax
import jax.numpy as jnp
from jax.experimental import pallas as pl
from jax.experimental.pallas import tpu as pltpu

LN_EPS = 1e-5
INV_TEMP = 2.0  # softmax(x / 0.5) == softmax(2.0 * x)


def _full_spec(shape):
    # whole-array block: block_shape == array dims, so the (8,128) rule is satisfied
    return pl.BlockSpec(shape, lambda: (0,) * len(shape))


# ---------------- fused Pallas kernel ----------------

def _gate_fused_kernel(x_ref,
                       w1_ref, b1_ref, g1_ref, be1_ref,
                       w2_ref, b2_ref, g2_ref, be2_ref,
                       w3_ref, b3_ref,
                       o_ref):
    """o = softmax( (LN2(relu(LN1(relu(x@W1+b1)) @ W2 + b2)) @ W3 + b3) * 2 )."""
    x = x_ref[...]  # (B, input_dim), f32

    def linear_relu_ln(h, w_ref, b_ref, gamma_ref, beta_ref):
        # bf16 weights streamed from HBM; upcast once, all math in f32.
        w = w_ref[...].astype(jnp.float32)
        y = jnp.dot(h, w, preferred_element_type=jnp.float32) + b_ref[...]
        y = jnp.maximum(y, 0.0)
        mean = jnp.mean(y, axis=-1, keepdims=True)
        var = jnp.mean(jnp.square(y - mean), axis=-1, keepdims=True)
        y_hat = (y - mean) * jax.lax.rsqrt(var + LN_EPS)
        return y_hat * gamma_ref[...] + beta_ref[...]

    h = linear_relu_ln(x, w1_ref, b1_ref, g1_ref, be1_ref)
    # TODO(synk): Dropout(p=0.1) is train-time stochastic; eval-mode identity here.
    h = linear_relu_ln(h, w2_ref, b2_ref, g2_ref, be2_ref)

    logits = jnp.dot(h, w3_ref[...].astype(jnp.float32),
                     preferred_element_type=jnp.float32) + b3_ref[...]
    logits = logits * INV_TEMP
    m = jnp.max(logits, axis=-1, keepdims=True)
    ex = jnp.exp(logits - m)
    denom = jnp.sum(ex, axis=-1, keepdims=True)
    o_ref[...] = ex * pl.reciprocal(denom, approx=True)   # EUP reciprocal


# ---------------- wrapper ----------------

def gate_forward(params, x, input_dim):
    """Matches Gate.forward: flatten, (pad if needed), MLP + softmax(./0.5)."""
    B = x.shape[0]
    x = x.astype(jnp.float32).reshape(B, -1)   # x.float(); x.view(B, -1)

    feat = x.shape[-1]
    if feat != input_dim:
        if feat > input_dim:
            # TODO(synk): F.adaptive_avg_pool1d preprocessing branch not needed at these
            # shapes (flattened dim == input_dim); not implemented.
            raise NotImplementedError("adaptive_avg_pool1d branch not implemented")
        x = jnp.pad(x, ((0, 0), (0, input_dim - feat)))   # F.pad(x, (0, padding))

    args = (x,
            params["w1"], params["b1"], params["g1"], params["be1"],
            params["w2"], params["b2"], params["g2"], params["be2"],
            params["w3"], params["b3"])
    n_experts = params["w3"].shape[1]

    return pl.pallas_call(
        _gate_fused_kernel,
        out_shape=jax.ShapeDtypeStruct((B, n_experts), jnp.float32),
        in_specs=[_full_spec(a.shape) for a in args],
        out_specs=_full_spec((B, n_experts)),
        compiler_params=pltpu.CompilerParams(
            # whole fused footprint (bf16 weights + f32 activations) is well under 1 MiB;
            # 16 MiB leaves generous headroom on every generation (v5e/v6e/v7x).
            vmem_limit_bytes=16 * 1024 * 1024,
        ),
    )(*args)
    # NOTE: if batch grows beyond this toy size, add a batch grid axis
    # (block B multiple of 8, marked "parallel") with constant weight index_maps
    # so weights stay VMEM-resident across batch tiles.


# ---------------- parameter init (xavier weights, zero biases, LN affine 1/0) ----------------

def _xavier_bf16(key, fan_in, fan_out):
    limit = (6.0 / (fan_in + fan_out)) ** 0.5
    # stored as (in, out) so the kernel computes x @ W  (== torch x @ weight.T)
    w = jax.random.uniform(key, (fan_in, fan_out), jnp.float32, -limit, limit)
    return w.astype(jnp.bfloat16)   # bf16 storage: halves weight bytes from HBM


def init_params(key, input_dim, hidden_dim, n_experts):
    k1, k2, k3 = jax.random.split(key, 3)
    f32 = jnp.float32
    return dict(
        w1=_xavier_bf16(k1, input_dim, hidden_dim),
        b1=jnp.zeros((1, hidden_dim), f32),
        g1=jnp.ones((1, hidden_dim), f32),
        be1=jnp.zeros((1, hidden_dim), f32),
        w2=_xavier_bf16(k2, hidden_dim, hidden_dim),
        b2=jnp.zeros((1, hidden_dim), f32),
        g2=jnp.ones((1, hidden_dim), f32),
        be2=jnp.zeros((1, hidden_dim), f32),
        w3=_xavier_bf16(k3, hidden_dim, n_experts),
        b3=jnp.zeros((1, n_experts), f32),
    )


# ---------------- main ----------------

if __name__ == "__main__":
    B, C, H, W = 2, 4, 16, 16          # in_shape = (4, 16, 16)
    input_dim = C * H * W              # 1024 -> flattened dim == input_dim (no pad/pool branch)
    hidden_dim = 64                    # Gate default hidden_dim
    n_experts = 4

    key = jax.random.PRNGKey(0)
    pkey, xkey = jax.random.split(key)
    params = init_params(pkey, input_dim, hidden_dim, n_experts)
    x = jax.random.normal(xkey, (B, C, H, W), jnp.float32)

    out = jax.jit(lambda p, xx: gate_forward(p, xx, input_dim))(params, x)
    out = jax.block_until_ready(out)

    assert out.shape == (B, n_experts) and out.dtype == jnp.float32
    assert bool(jnp.all(jnp.isfinite(out)))
    # gate weights are a softmax -> rows sum to ~1
    assert bool(jnp.all(jnp.abs(jnp.sum(out, axis=-1) - 1.0) < 1e-2))
    print("KERNEL_OK")
</pallas_src>

<mosaic_0001>
module attributes {stable_mosaic.version = 11 : i64} {
  func.func @_gate_fused_kernel(%arg0: memref<2x1024xf32, #tpu.memory_space<vmem>>, %arg1: memref<1024x64xbf16, #tpu.memory_space<vmem>>, %arg2: memref<1x64xf32, #tpu.memory_space<vmem>>, %arg3: memref<1x64xf32, #tpu.memory_space<vmem>>, %arg4: memref<1x64xf32, #tpu.memory_space<vmem>>, %arg5: memref<64x64xbf16, #tpu.memory_space<vmem>>, %arg6: memref<1x64xf32, #tpu.memory_space<vmem>>, %arg7: memref<1x64xf32, #tpu.memory_space<vmem>>, %arg8: memref<1x64xf32, #tpu.memory_space<vmem>>, %arg9: memref<64x4xbf16, #tpu.memory_space<vmem>>, %arg10: memref<1x4xf32, #tpu.memory_space<vmem>>, %arg11: memref<2x4xf32, #tpu.memory_space<vmem>>) attributes {dimension_semantics = [], scalar_prefetch = 0 : i64, scratch_operands = 0 : i64, tpu.core_type = #tpu.core_type<tc>} {
    %c0 = arith.constant 0 : index
    %c0_0 = arith.constant 0 : index
    %0 = vector.load %arg0[%c0, %c0_0] : memref<2x1024xf32, #tpu.memory_space<vmem>>, vector<2x1024xf32>
    %c0_1 = arith.constant 0 : index
    %c0_2 = arith.constant 0 : index
    %1 = vector.load %arg1[%c0_1, %c0_2] : memref<1024x64xbf16, #tpu.memory_space<vmem>>, vector<1024x64xbf16>
    %2 = arith.extf %1 : vector<1024x64xbf16> to vector<1024x64xf32>
    %cst = arith.constant dense<0.000000e+00> : vector<2x64xf32>
    %3 = tpu.matmul %0, %2, %cst {dimension_numbers = #tpu.dot_dimension_numbers<[1], [0], [0], [1], [0, 0, 1, 1], [], []>} : vector<2x1024xf32>, vector<1024x64xf32>, vector<2x64xf32> -> vector<2x64xf32>
    %c0_3 = arith.constant 0 : index
    %c0_4 = arith.constant 0 : index
    %4 = vector.load %arg2[%c0_3, %c0_4] : memref<1x64xf32, #tpu.memory_space<vmem>>, vector<1x64xf32>
    %5 = vector.broadcast %4 : vector<1x64xf32> to vector<2x64xf32>
    %6 = arith.addf %3, %5 : vector<2x64xf32>
    %cst_5 = arith.constant 0.000000e+00 : f32
    %7 = vector.broadcast %cst_5 : f32 to vector<2x64xf32>
    %8 = arith.maximumf %6, %7 : vector<2x64xf32>
    %cst_6 = arith.constant dense<0.000000e+00> : vector<2xf32>
    %9 = vector.multi_reduction <add>, %8, %cst_6 [1] : vector<2x64xf32> to vector<2xf32>
    %10 = vector.shape_cast %9 : vector<2xf32> to vector<2x1xf32>
    %cst_7 = arith.constant 6.400000e+01 : f32
    %11 = vector.broadcast %cst_7 : f32 to vector<2x1xf32>
    %12 = arith.divf %10, %11 : vector<2x1xf32>
    %13 = vector.broadcast %12 : vector<2x1xf32> to vector<2x64xf32>
    %14 = arith.subf %8, %13 : vector<2x64xf32>
    %15 = arith.mulf %14, %14 : vector<2x64xf32>
    %cst_8 = arith.constant dense<0.000000e+00> : vector<2xf32>
    %16 = vector.multi_reduction <add>, %15, %cst_8 [1] : vector<2x64xf32> to vector<2xf32>
    %17 = vector.shape_cast %16 : vector<2xf32> to vector<2x1xf32>
    %cst_9 = arith.constant 6.400000e+01 : f32
    %18 = vector.broadcast %cst_9 : f32 to vector<2x1xf32>
    %19 = arith.divf %17, %18 : vector<2x1xf32>
    %20 = vector.broadcast %12 : vector<2x1xf32> to vector<2x64xf32>
    %21 = arith.subf %8, %20 : vector<2x64xf32>
    %cst_10 = arith.constant 9.99999974E-6 : f32
    %22 = vector.broadcast %cst_10 : f32 to vector<2x1xf32>
    %23 = arith.addf %19, %22 : vector<2x1xf32>
    %24 = math.rsqrt %23 : vector<2x1xf32>
    %25 = vector.broadcast %24 : vector<2x1xf32> to vector<2x64xf32>
    %26 = arith.mulf %21, %25 : vector<2x64xf32>
    %c0_11 = arith.constant 0 : index
    %c0_12 = arith.constant 0 : index
    %27 = vector.load %arg3[%c0_11, %c0_12] : memref<1x64xf32, #tpu.memory_space<vmem>>, vector<1x64xf32>
    %28 = vector.broadcast %27 : vector<1x64xf32> to vector<2x64xf32>
    %29 = arith.mulf %26, %28 : vector<2x64xf32>
    %c0_13 = arith.constant 0 : index
    %c0_14 = arith.constant 0 : index
    %30 = vector.load %arg4[%c0_13, %c0_14] : memref<1x64xf32, #tpu.memory_space<vmem>>, vector<1x64xf32>
    %31 = vector.broadcast %30 : vector<1x64xf32> to vector<2x64xf32>
    %32 = arith.addf %29, %31 : vector<2x64xf32>
    %c0_15 = arith.constant 0 : index
    %c0_16 = arith.constant 0 : index
    %33 = vector.load %arg5[%c0_15, %c0_16] : memref<64x64xbf16, #tpu.memory_space<vmem>>, vector<64x64xbf16>
    %34 = arith.extf %33 : vector<64x64xbf16> to vector<64x64xf32>
    %cst_17 = arith.constant dense<0.000000e+00> : vector<2x64xf32>
    %35 = tpu.matmul %32, %34, %cst_17 {dimension_numbers = #tpu.dot_dimension_numbers<[1], [0], [0], [1], [0, 0, 1, 1], [], []>} : vector<2x64xf32>, vector<64x64xf32>, vector<2x64xf32> -> vector<2x64xf32>
    %c0_18 = arith.constant 0 : index
    %c0_19 = arith.constant 0 : index
    %36 = vector.load %arg6[%c0_18, %c0_19] : memref<1x64xf32, #tpu.memory_space<vmem>>, vector<1x64xf32>
    %37 = vector.broadcast %36 : vector<1x64xf32> to vector<2x64xf32>
    %38 = arith.addf %35, %37 : vector<2x64xf32>
    %cst_20 = arith.constant 0.000000e+00 : f32
    %39 = vector.broadcast %cst_20 : f32 to vector<2x64xf32>
    %40 = arith.maximumf %38, %39 : vector<2x64xf32>
    %cst_21 = arith.constant dense<0.000000e+00> : vector<2xf32>
    %41 = vector.multi_reduction <add>, %40, %cst_21 [1] : vector<2x64xf32> to vector<2xf32>
    %42 = vector.shape_cast %41 : vector<2xf32> to vector<2x1xf32>
    %cst_22 = arith.constant 6.400000e+01 : f32
    %43 = vector.broadcast %cst_22 : f32 to vector<2x1xf32>
    %44 = arith.divf %42, %43 : vector<2x1xf32>
    %45 = vector.broadcast %44 : vector<2x1xf32> to vector<2x64xf32>
    %46 = arith.subf %40, %45 : vector<2x64xf32>
    %47 = arith.mulf %46, %46 : vector<2x64xf32>
    %cst_23 = arith.constant dense<0.000000e+00> : vector<2xf32>
    %48 = vector.multi_reduction <add>, %47, %cst_23 [1] : vector<2x64xf32> to vector<2xf32>
    %49 = vector.shape_cast %48 : vector<2xf32> to vector<2x1xf32>
    %cst_24 = arith.constant 6.400000e+01 : f32
    %50 = vector.broadcast %cst_24 : f32 to vector<2x1xf32>
    %51 = arith.divf %49, %50 : vector<2x1xf32>
    %52 = vector.broadcast %44 : vector<2x1xf32> to vector<2x64xf32>
    %53 = arith.subf %40, %52 : vector<2x64xf32>
    %cst_25 = arith.constant 9.99999974E-6 : f32
    %54 = vector.broadcast %cst_25 : f32 to vector<2x1xf32>
    %55 = arith.addf %51, %54 : vector<2x1xf32>
    %56 = math.rsqrt %55 : vector<2x1xf32>
    %57 = vector.broadcast %56 : vector<2x1xf32> to vector<2x64xf32>
    %58 = arith.mulf %53, %57 : vector<2x64xf32>
    %c0_26 = arith.constant 0 : index
    %c0_27 = arith.constant 0 : index
    %59 = vector.load %arg7[%c0_26, %c0_27] : memref<1x64xf32, #tpu.memory_space<vmem>>, vector<1x64xf32>
    %60 = vector.broadcast %59 : vector<1x64xf32> to vector<2x64xf32>
    %61 = arith.mulf %58, %60 : vector<2x64xf32>
    %c0_28 = arith.constant 0 : index
    %c0_29 = arith.constant 0 : index
    %62 = vector.load %arg8[%c0_28, %c0_29] : memref<1x64xf32, #tpu.memory_space<vmem>>, vector<1x64xf32>
    %63 = vector.broadcast %62 : vector<1x64xf32> to vector<2x64xf32>
    %64 = arith.addf %61, %63 : vector<2x64xf32>
    %c0_30 = arith.constant 0 : index
    %c0_31 = arith.constant 0 : index
    %65 = vector.load %arg9[%c0_30, %c0_31] : memref<64x4xbf16, #tpu.memory_space<vmem>>, vector<64x4xbf16>
    %66 = arith.extf %65 : vector<64x4xbf16> to vector<64x4xf32>
    %cst_32 = arith.constant dense<0.000000e+00> : vector<2x4xf32>
    %67 = tpu.matmul %64, %66, %cst_32 {dimension_numbers = #tpu.dot_dimension_numbers<[1], [0], [0], [1], [0, 0, 1, 1], [], []>} : vector<2x64xf32>, vector<64x4xf32>, vector<2x4xf32> -> vector<2x4xf32>
    %c0_33 = arith.constant 0 : index
    %c0_34 = arith.constant 0 : index
    %68 = vector.load %arg10[%c0_33, %c0_34] : memref<1x4xf32, #tpu.memory_space<vmem>>, vector<1x4xf32>
    %69 = vector.broadcast %68 : vector<1x4xf32> to vector<2x4xf32>
    %70 = arith.addf %67, %69 : vector<2x4xf32>
    %cst_35 = arith.constant 2.000000e+00 : f32
    %71 = vector.broadcast %cst_35 : f32 to vector<2x4xf32>
    %72 = arith.mulf %70, %71 : vector<2x4xf32>
    %cst_36 = arith.constant dense<0xFF800000> : vector<2xf32>
    %73 = vector.multi_reduction <maximumf>, %72, %cst_36 [1] : vector<2x4xf32> to vector<2xf32>
    %74 = vector.shape_cast %73 : vector<2xf32> to vector<2x1xf32>
    %75 = vector.broadcast %74 : vector<2x1xf32> to vector<2x4xf32>
    %76 = arith.subf %72, %75 : vector<2x4xf32>
    %77 = math.exp %76 : vector<2x4xf32>
    %cst_37 = arith.constant dense<0.000000e+00> : vector<2xf32>
    %78 = vector.multi_reduction <add>, %77, %cst_37 [1] : vector<2x4xf32> to vector<2xf32>
    %79 = vector.shape_cast %78 : vector<2xf32> to vector<2x1xf32>
    %80 = tpu.reciprocal %79 {approx = true} : vector<2x1xf32> -> vector<2x1xf32>
    %81 = vector.broadcast %80 : vector<2x1xf32> to vector<2x4xf32>
    %82 = arith.mulf %77, %81 : vector<2x4xf32>
    %c0_38 = arith.constant 0 : index
    %c0_39 = arith.constant 0 : index
    %83 = vector.load %arg11[%c0_38, %c0_39] : memref<2x4xf32, #tpu.memory_space<vmem>>, vector<2x4xf32>
    tpu.vector_store %arg11[%c0_38, %c0_39], %82 {strides = array<i32>} : memref<2x4xf32, #tpu.memory_space<vmem>>, vector<2x4xf32>,
    return
  }
}

</mosaic_0001>

<llo_original>
// kernel: _lambda_.1
$region0: #{_lambda_.1}
  #allocation0 [shape = 'u32[]', space=smem, size = 0x4, offset = 0x4, fixed_abs, tag = 'smem constant byte address 0x4 - core index']
  #allocation1 [shape = 'u32[144,128]{1,0:T(1,128)}', space=vmem, size = 0x12000, scoped, tag = 'internal scratch']
  %s0 = inlined_call_operand.vmem [shape: f32[2,1024], index: 0, kind: input, shape index: {}]
  %s1 = inlined_call_operand.vmem [shape: bf16[1024,64], index: 1, kind: input, shape index: {}]
  %s2 = inlined_call_operand.vmem [shape: f32[1,64], index: 2, kind: input, shape index: {}]
  %s3 = inlined_call_operand.vmem [shape: f32[1,64], index: 3, kind: input, shape index: {}]
  %s4 = inlined_call_operand.vmem [shape: f32[1,64], index: 4, kind: input, shape index: {}]
  %s5 = inlined_call_operand.vmem [shape: bf16[64,64], index: 5, kind: input, shape index: {}]
  %s6 = inlined_call_operand.vmem [shape: f32[1,64], index: 6, kind: input, shape index: {}]
  %s7 = inlined_call_operand.vmem [shape: f32[1,64], index: 7, kind: input, shape index: {}]
  %s8 = inlined_call_operand.vmem [shape: f32[1,64], index: 8, kind: input, shape index: {}]
  %s9 = inlined_call_operand.vmem [shape: bf16[64,4], index: 9, kind: input, shape index: {}]
  %s10 = inlined_call_operand.vmem [shape: f32[1,4], index: 10, kind: input, shape index: {}]
  %s11 = inlined_call_operand.hbm [shape: f32[2,4], index: 11, kind: output, shape index: {}]
  %s12 = sld [smem:[#allocation0]]
  $region54: #{_lambda_.1} parent=0
    _
  %s14 = ssub.s32 1, %s12
  %s15 = scalar_select 0, %s14, %s12
  $region1: #{_lambda_.1} parent=0
    #allocation2 [shape = 'u8[1024]{0}', space=vmem, size = 0x400, scoped, tag = 'output window, operand 0, single buffered']
    #allocation3 [shape = 's32[1]{0}', space=sflag, size = 0x4, scoped, tag = 'scoped memory for _lambda_.1']
    %16 = vsyncpa [#allocation3], 0
    // Predicated region
    $region2: #{_lambda_.1} parent=1 // pred_check
      _
    $region3: #{_lambda_.1} parent=1 // pred_check_branch
      %18 = sbr.rel (0) target = $region5
    $region4: #{_lambda_.1} parent=1 // pred_region
      _
    $region5: #{_lambda_.1} parent=1 // pred_fallthru
      _
    // Predicated region
    $region6: #{_lambda_.1} parent=1 // pred_check
      _
    $region7: #{_lambda_.1} parent=1 // pred_check_branch
      %20 = sbr.rel (0) target = $region9
    $region8: #{_lambda_.1} parent=1 // pred_region
      _
    $region9: #{_lambda_.1} parent=1 // pred_fallthru
      _
    // Predicated region
    $region10: #{_lambda_.1} parent=1 // pred_check
      _
    $region11: #{_lambda_.1} parent=1 // pred_check_branch
      %22 = sbr.rel (0) target = $region13
    $region12: #{_lambda_.1} parent=1 // pred_region
      _
    $region13: #{_lambda_.1} parent=1 // pred_fallthru
      _
    // Predicated region
    $region14: #{_lambda_.1} parent=1 // pred_check
      _
    $region15: #{_lambda_.1} parent=1 // pred_check_branch
      %24 = sbr.rel (0) target = $region17
    $region16: #{_lambda_.1} parent=1 // pred_region
      _
    $region17: #{_lambda_.1} parent=1 // pred_fallthru
      _
    // Predicated region
    $region18: #{_lambda_.1} parent=1 // pred_check
      _
    $region19: #{_lambda_.1} parent=1 // pred_check_branch
      %26 = sbr.rel (0) target = $region21
    $region20: #{_lambda_.1} parent=1 // pred_region
      _
    $region21: #{_lambda_.1} parent=1 // pred_fallthru
      _
    // Predicated region
    $region22: #{_lambda_.1} parent=1 // pred_check
      _
    $region23: #{_lambda_.1} parent=1 // pred_check_branch
      %28 = sbr.rel (0) target = $region25
    $region24: #{_lambda_.1} parent=1 // pred_region
      _
    $region25: #{_lambda_.1} parent=1 // pred_fallthru
      _
    // Predicated region
    $region26: #{_lambda_.1} parent=1 // pred_check
      _
    $region27: #{_lambda_.1} parent=1 // pred_check_branch
      %30 = sbr.rel (0) target = $region29
    $region28: #{_lambda_.1} parent=1 // pred_region
      _
    $region29: #{_lambda_.1} parent=1 // pred_fallthru
      _
    // Predicated region
    $region30: #{_lambda_.1} parent=1 // pred_check
      _
    $region31: #{_lambda_.1} parent=1 // pred_check_branch
      %32 = sbr.rel (0) target = $region33
    $region32: #{_lambda_.1} parent=1 // pred_region
      _
    $region33: #{_lambda_.1} parent=1 // pred_fallthru
      _
    // Predicated region
    $region34: #{_lambda_.1} parent=1 // pred_check
      _
    $region35: #{_lambda_.1} parent=1 // pred_check_branch
      %34 = sbr.rel (0) target = $region37
    $region36: #{_lambda_.1} parent=1 // pred_region
      _
    $region37: #{_lambda_.1} parent=1 // pred_fallthru
      _
    // Predicated region
    $region38: #{_lambda_.1} parent=1 // pred_check
      _
    $region39: #{_lambda_.1} parent=1 // pred_check_branch
      %36 = sbr.rel (0) target = $region41
    $region40: #{_lambda_.1} parent=1 // pred_region
      _
    $region41: #{_lambda_.1} parent=1 // pred_fallthru
      _
    // Predicated region
    $region42: #{_lambda_.1} parent=1 // pred_check
      _
    $region43: #{_lambda_.1} parent=1 // pred_check_branch
      %38 = sbr.rel (0) target = $region45
    $region44: #{_lambda_.1} parent=1 // pred_region
      _
    $region45: #{_lambda_.1} parent=1 // pred_fallthru
      _
    %v39 = vld [vmem:[%s0] sm:$0xff]
    %v40 = vld [vmem:[%s0 + $0x8] sm:$0xff]
    %v41 = vld [vmem:[%s1] sm:$0xf]
    %v42 = vld [vmem:[%s1 + $0x4] sm:$0xf]
    %v43 = vld [vmem:[%s1 + $0x8] sm:$0xf]
    %v44 = vld [vmem:[%s1 + $0xc] sm:$0xf]
    %v45 = vld [vmem:[%s1 + $0x10] sm:$0xf]
    %v46 = vld [vmem:[%s1 + $0x14] sm:$0xf]
    %v47 = vld [vmem:[%s1 + $0x18] sm:$0xf]
    %v48 = vld [vmem:[%s1 + $0x1c] sm:$0xf]
    %v49 = vld [vmem:[%s1 + $0x20] sm:$0xf]
    %v50 = vld [vmem:[%s1 + $0x24] sm:$0xf]
    %v51 = vld [vmem:[%s1 + $0x28] sm:$0xf]
    %v52 = vld [vmem:[%s1 + $0x2c] sm:$0xf]
    %v53 = vld [vmem:[%s1 + $0x30] sm:$0xf]
    %v54 = vld [vmem:[%s1 + $0x34] sm:$0xf]
    %v55 = vld [vmem:[%s1 + $0x38] sm:$0xf]
    %v56 = vld [vmem:[%s1 + $0x3c] sm:$0xf]
    %v57 = vld [vmem:[%s1 + $0x40] sm:$0xf]
    %v58 = vld [vmem:[%s1 + $0x44] sm:$0xf]
    %v59 = vld [vmem:[%s1 + $0x48] sm:$0xf]
    %v60 = vld [vmem:[%s1 + $0x4c] sm:$0xf]
    %v61 = vld [vmem:[%s1 + $0x50] sm:$0xf]
    %v62 = vld [vmem:[%s1 + $0x54] sm:$0xf]
    %v63 = vld [vmem:[%s1 + $0x58] sm:$0xf]
    %v64 = vld [vmem:[%s1 + $0x5c] sm:$0xf]
    %v65 = vld [vmem:[%s1 + $0x60] sm:$0xf]
    %v66 = vld [vmem:[%s1 + $0x64] sm:$0xf]
    %v67 = vld [vmem:[%s1 + $0x68] sm:$0xf]
    %v68 = vld [vmem:[%s1 + $0x6c] sm:$0xf]
    %v69 = vld [vmem:[%s1 + $0x70] sm:$0xf]
    %v70 = vld [vmem:[%s1 + $0x74] sm:$0xf]
    %v71 = vld [vmem:[%s1 + $0x78] sm:$0xf]
    %v72 = vld [vmem:[%s1 + $0x7c] sm:$0xf]
    %v73 = vld [vmem:[%s1 + $0x80] sm:$0xf]
    %v74 = vld [vmem:[%s1 + $0x84] sm:$0xf]
    %v75 = vld [vmem:[%s1 + $0x88] sm:$0xf]
    %v76 = vld [vmem:[%s1 + $0x8c] sm:$0xf]
    %v77 = vld [vmem:[%s1 + $0x90] sm:$0xf]
    %v78 = vld [vmem:[%s1 + $0x94] sm:$0xf]
    %v79 = vld [vmem:[%s1 + $0x98] sm:$0xf]
    %v80 = vld [vmem:[%s1 + $0x9c] sm:$0xf]
    %v81 = vld [vmem:[%s1 + $0xa0] sm:$0xf]
    %v82 = vld [vmem:[%s1 + $0xa4] sm:$0xf]
    %v83 = vld [vmem:[%s1 + $0xa8] sm:$0xf]
    %v84 = vld [vmem:[%s1 + $0xac] sm:$0xf]
    %v85 = vld [vmem:[%s1 + $0xb0] sm:$0xf]
    %v86 = vld [vmem:[%s1 + $0xb4] sm:$0xf]
    %v87 = vld [vmem:[%s1 + $0xb8] sm:$0xf]
    %v88 = vld [vmem:[%s1 + $0xbc] sm:$0xf]
    %v89 = vld [vmem:[%s1 + $0xc0] sm:$0xf]
    %v90 = vld [vmem:[%s1 + $0xc4] sm:$0xf]
    %v91 = vld [vmem:[%s1 + $0xc8] sm:$0xf]
    %v92 = vld [vmem:[%s1 + $0xcc] sm:$0xf]
    %v93 = vld [vmem:[%s1 + $0xd0] sm:$0xf]
    %v94 = vld [vmem:[%s1 + $0xd4] sm:$0xf]
    %v95 = vld [vmem:[%s1 + $0xd8] sm:$0xf]
    %v96 = vld [vmem:[%s1 + $0xdc] sm:$0xf]
    %v97 = vld [vmem:[%s1 + $0xe0] sm:$0xf]
    %v98 = vld [vmem:[%s1 + $0xe4] sm:$0xf]
    %v99 = vld [vmem:[%s1 + $0xe8] sm:$0xf]
    %v100 = vld [vmem:[%s1 + $0xec] sm:$0xf]
    %v101 = vld [vmem:[%s1 + $0xf0] sm:$0xf]
    %v102 = vld [vmem:[%s1 + $0xf4] sm:$0xf]
    %v103 = vld [vmem:[%s1 + $0xf8] sm:$0xf]
    %v104 = vld [vmem:[%s1 + $0xfc] sm:$0xf]
    %v105 = vld [vmem:[%s1 + $0x100] sm:$0xf]
    %v106 = vld [vmem:[%s1 + $0x104] sm:$0xf]
    %v107 = vld [vmem:[%s1 + $0x108] sm:$0xf]
    %v108 = vld [vmem:[%s1 + $0x10c] sm:$0xf]
    %v109 = vld [vmem:[%s1 + $0x110] sm:$0xf]
    %v110 = vld [vmem:[%s1 + $0x114] sm:$0xf]
    %v111 = vld [vmem:[%s1 + $0x118] sm:$0xf]
    %v112 = vld [vmem:[%s1 + $0x11c] sm:$0xf]
    %v113 = vld [vmem:[%s1 + $0x120] sm:$0xf]
    %v114 = vld [vmem:[%s1 + $0x124] sm:$0xf]
    %v115 = vld [vmem:[%s1 + $0x128] sm:$0xf]
    %v116 = vld [vmem:[%s1 + $0x12c] sm:$0xf]
    %v117 = vld [vmem:[%s1 + $0x130] sm:$0xf]
    %v118 = vld [vmem:[%s1 + $0x134] sm:$0xf]
    %v119 = vld [vmem:[%s1 + $0x138] sm:$0xf]
    %v120 = vld [vmem:[%s1 + $0x13c] sm:$0xf]
    %v121 = vld [vmem:[%s1 + $0x140] sm:$0xf]
    %v122 = vld [vmem:[%s1 + $0x144] sm:$0xf]
    %v123 = vld [vmem:[%s1 + $0x148] sm:$0xf]
    %v124 = vld [vmem:[%s1 + $0x14c] sm:$0xf]
    %v125 = vld [vmem:[%s1 + $0x150] sm:$0xf]
    %v126 = vld [vmem:[%s1 + $0x154] sm:$0xf]
    %v127 = vld [vmem:[%s1 + $0x158] sm:$0xf]
    %v128 = vld [vmem:[%s1 + $0x15c] sm:$0xf]
    %v129 = vld [vmem:[%s1 + $0x160] sm:$0xf]
    %v130 = vld [vmem:[%s1 + $0x164] sm:$0xf]
    %v131 = vld [vmem:[%s1 + $0x168] sm:$0xf]
    %v132 = vld [vmem:[%s1 + $0x16c] sm:$0xf]
    %v133 = vld [vmem:[%s1 + $0x170] sm:$0xf]
    %v134 = vld [vmem:[%s1 + $0x174] sm:$0xf]
    %v135 = vld [vmem:[%s1 + $0x178] sm:$0xf]
    %v136 = vld [vmem:[%s1 + $0x17c] sm:$0xf]
    %v137 = vld [vmem:[%s1 + $0x180] sm:$0xf]
    %v138 = vld [vmem:[%s1 + $0x184] sm:$0xf]
    %v139 = vld [vmem:[%s1 + $0x188] sm:$0xf]
    %v140 = vld [vmem:[%s1 + $0x18c] sm:$0xf]
    %v141 = vld [vmem:[%s1 + $0x190] sm:$0xf]
    %v142 = vld [vmem:[%s1 + $0x194] sm:$0xf]
    %v143 = vld [vmem:[%s1 + $0x198] sm:$0xf]
    %v144 = vld [vmem:[%s1 + $0x19c] sm:$0xf]
    %v145 = vld [vmem:[%s1 + $0x1a0] sm:$0xf]
    %v146 = vld [vmem:[%s1 + $0x1a4] sm:$0xf]
    %v147 = vld [vmem:[%s1 + $0x1a8] sm:$0xf]
    %v148 = vld [vmem:[%s1 + $0x1ac] sm:$0xf]
    %v149 = vld [vmem:[%s1 + $0x1b0] sm:$0xf]
    %v150 = vld [vmem:[%s1 + $0x1b4] sm:$0xf]
    %v151 = vld [vmem:[%s1 + $0x1b8] sm:$0xf]
    %v152 = vld [vmem:[%s1 + $0x1bc] sm:$0xf]
    %v153 = vld [vmem:[%s1 + $0x1c0] sm:$0xf]
    %v154 = vld [vmem:[%s1 + $0x1c4] sm:$0xf]
    %v155 = vld [vmem:[%s1 + $0x1c8] sm:$0xf]
    %v156 = vld [vmem:[%s1 + $0x1cc] sm:$0xf]
    %v157 = vld [vmem:[%s1 + $0x1d0] sm:$0xf]
    %v158 = vld [vmem:[%s1 + $0x1d4] sm:$0xf]
    %v159 = vld [vmem:[%s1 + $0x1d8] sm:$0xf]
    %v160 = vld [vmem:[%s1 + $0x1dc] sm:$0xf]
    %v161 = vld [vmem:[%s1 + $0x1e0] sm:$0xf]
    %v162 = vld [vmem:[%s1 + $0x1e4] sm:$0xf]
    %v163 = vld [vmem:[%s1 + $0x1e8] sm:$0xf]
    %v164 = vld [vmem:[%s1 + $0x1ec] sm:$0xf]
    %v165 = vld [vmem:[%s1 + $0x1f0] sm:$0xf]
    %v166 = vld [vmem:[%s1 + $0x1f4] sm:$0xf]
    %v167 = vld [vmem:[%s1 + $0x1f8] sm:$0xf]
    %v168 = vld [vmem:[%s1 + $0x1fc] sm:$0xf]
    %v169 = vunpack.c.l.bf16 %v41
    %v170 = vunpack.c.l.bf16 %v42
    %v171 = vunpack.c.l.bf16 %v43
    %v172 = vunpack.c.l.bf16 %v44
    %v173 = vunpack.c.l.bf16 %v45
    %v174 = vunpack.c.l.bf16 %v46
    %v175 = vunpack.c.l.bf16 %v47
    %v176 = vunpack.c.l.bf16 %v48
    %v177 = vunpack.c.l.bf16 %v49
    %v178 = vunpack.c.l.bf16 %v50
    %v179 = vunpack.c.l.bf16 %v51
    %v180 = vunpack.c.l.bf16 %v52
    %v181 = vunpack.c.l.bf16 %v53
    %v182 = vunpack.c.l.bf16 %v54
    %v183 = vunpack.c.l.bf16 %v55
    %v184 = vunpack.c.l.bf16 %v56
    %v185 = vunpack.c.l.bf16 %v57
    %v186 = vunpack.c.l.bf16 %v58
    %v187 = vunpack.c.l.bf16 %v59
    %v188 = vunpack.c.l.bf16 %v60
    %v189 = vunpack.c.l.bf16 %v61
    %v190 = vunpack.c.l.bf16 %v62
    %v191 = vunpack.c.l.bf16 %v63
    %v192 = vunpack.c.l.bf16 %v64
    %v193 = vunpack.c.l.bf16 %v65
    %v194 = vunpack.c.l.bf16 %v66
    %v195 = vunpack.c.l.bf16 %v67
    %v196 = vunpack.c.l.bf16 %v68
    %v197 = vunpack.c.l.bf16 %v69
    %v198 = vunpack.c.l.bf16 %v70
    %v199 = vunpack.c.l.bf16 %v71
    %v200 = vunpack.c.l.bf16 %v72
    %v201 = vunpack.c.l.bf16 %v73
    %v202 = vunpack.c.l.bf16 %v74
    %v203 = vunpack.c.l.bf16 %v75
    %v204 = vunpack.c.l.bf16 %v76
    %v205 = vunpack.c.l.bf16 %v77
    %v206 = vunpack.c.l.bf16 %v78
    %v207 = vunpack.c.l.bf16 %v79
    %v208 = vunpack.c.l.bf16 %v80
    %v209 = vunpack.c.l.bf16 %v81
    %v210 = vunpack.c.l.bf16 %v82
    %v211 = vunpack.c.l.bf16 %v83
    %v212 = vunpack.c.l.bf16 %v84
    %v213 = vunpack.c.l.bf16 %v85
    %v214 = vunpack.c.l.bf16 %v86
    %v215 = vunpack.c.l.bf16 %v87
    %v216 = vunpack.c.l.bf16 %v88
    %v217 = vunpack.c.l.bf16 %v89
    %v218 = vunpack.c.l.bf16 %v90
    %v219 = vunpack.c.l.bf16 %v91
    %v220 = vunpack.c.l.bf16 %v92
    %v221 = vunpack.c.l.bf16 %v93
    %v222 = vunpack.c.l.bf16 %v94
    %v223 = vunpack.c.l.bf16 %v95
    %v224 = vunpack.c.l.bf16 %v96
    %v225 = vunpack.c.l.bf16 %v97
    %v226 = vunpack.c.l.bf16 %v98
    %v227 = vunpack.c.l.bf16 %v99
    %v228 = vunpack.c.l.bf16 %v100
    %v229 = vunpack.c.l.bf16 %v101
    %v230 = vunpack.c.l.bf16 %v102
    %v231 = vunpack.c.l.bf16 %v103
    %v232 = vunpack.c.l.bf16 %v104
    %v233 = vunpack.c.l.bf16 %v105
    %v234 = vunpack.c.l.bf16 %v106
    %v235 = vunpack.c.l.bf16 %v107
    %v236 = vunpack.c.l.bf16 %v108
    %v237 = vunpack.c.l.bf16 %v109
    %v238 = vunpack.c.l.bf16 %v110
    %v239 = vunpack.c.l.bf16 %v111
    %v240 = vunpack.c.l.bf16 %v112
    %v241 = vunpack.c.l.bf16 %v113
    %v242 = vunpack.c.l.bf16 %v114
    %v243 = vunpack.c.l.bf16 %v115
    %v244 = vunpack.c.l.bf16 %v116
    %v245 = vunpack.c.l.bf16 %v117
    %v246 = vunpack.c.l.bf16 %v118
    %v247 = vunpack.c.l.bf16 %v119
    %v248 = vunpack.c.l.bf16 %v120
    %v249 = vunpack.c.l.bf16 %v121
    %v250 = vunpack.c.l.bf16 %v122
    %v251 = vunpack.c.l.bf16 %v123
    %v252 = vunpack.c.l.bf16 %v124
    %v253 = vunpack.c.l.bf16 %v125
    %v254 = vunpack.c.l.bf16 %v126
    %v255 = vunpack.c.l.bf16 %v127
    %v256 = vunpack.c.l.bf16 %v128
    %v257 = vunpack.c.l.bf16 %v129
    %v258 = vunpack.c.l.bf16 %v130
    %v259 = vunpack.c.l.bf16 %v131
    %v260 = vunpack.c.l.bf16 %v132
    %v261 = vunpack.c.l.bf16 %v133
    %v262 = vunpack.c.l.bf16 %v134
    %v263 = vunpack.c.l.bf16 %v135
    %v264 = vunpack.c.l.bf16 %v136
    %v265 = vunpack.c.l.bf16 %v137
    %v266 = vunpack.c.l.bf16 %v138
    %v267 = vunpack.c.l.bf16 %v139
    %v268 = vunpack.c.l.bf16 %v140
    %v269 = vunpack.c.l.bf16 %v141
    %v270 = vunpack.c.l.bf16 %v142
    %v271 = vunpack.c.l.bf16 %v143
    %v272 = vunpack.c.l.bf16 %v144
    %v273 = vunpack.c.l.bf16 %v145
    %v274 = vunpack.c.l.bf16 %v146
    %v275 = vunpack.c.l.bf16 %v147
    %v276 = vunpack.c.l.bf16 %v148
    %v277 = vunpack.c.l.bf16 %v149
    %v278 = vunpack.c.l.bf16 %v150
    %v279 = vunpack.c.l.bf16 %v151
    %v280 = vunpack.c.l.bf16 %v152
    %v281 = vunpack.c.l.bf16 %v153
    %v282 = vunpack.c.l.bf16 %v154
    %v283 = vunpack.c.l.bf16 %v155
    %v284 = vunpack.c.l.bf16 %v156
    %v285 = vunpack.c.l.bf16 %v157
    %v286 = vunpack.c.l.bf16 %v158
    %v287 = vunpack.c.l.bf16 %v159
    %v288 = vunpack.c.l.bf16 %v160
    %v289 = vunpack.c.l.bf16 %v161
    %v290 = vunpack.c.l.bf16 %v162
    %v291 = vunpack.c.l.bf16 %v163
    %v292 = vunpack.c.l.bf16 %v164
    %v293 = vunpack.c.l.bf16 %v165
    %v294 = vunpack.c.l.bf16 %v166
    %v295 = vunpack.c.l.bf16 %v167
    %v296 = vunpack.c.l.bf16 %v168
    %v297 = vld [vmem:[%s2] sm:$0x1]
    %v299 = vlaneseq
    %v300 = vshrl.u32 %v299, 7
    %v301 = vsub.s32 0, %v300
    %v302 = vrot.slane %v297, %v301
    %v306 = vcombine.high %v39, %v39
    %v308 = vunpack.c.l.s4 1983009808
    %v309 = vunpack.c.0.s8 %v308
    %v310 = vlaneseq
    %v311 = vshrl.u32 %v310, 7
    %v312 = vsub.s32 %v309, %v311
    %v313 = vrot.slane %v39, %v312
    %v315 = vunpack.c.l.s4 1983009808
    %v316 = vunpack.c.0.s8 %v315
    %v317 = vlaneseq
    %v318 = vshrl.u32 %v317, 7
    %v319 = vsub.s32 %v316, %v318
    %v320 = vrot.slane %v306, %v319
    %v321 = vcombine.high %v313, %v313
    %v322 = vcombine.high %v320, %v320
    %v323 = vcombine.high %v40, %v40
    %v325 = vunpack.c.l.s4 1983009808
    %v326 = vunpack.c.0.s8 %v325
    %v327 = vlaneseq
    %v328 = vshrl.u32 %v327, 7
    %v329 = vsub.s32 %v326, %v328
    %v330 = vrot.slane %v40, %v329
    %v332 = vunpack.c.l.s4 1983009808
    %v333 = vunpack.c.0.s8 %v332
    %v334 = vlaneseq
    %v335 = vshrl.u32 %v334, 7
    %v336 = vsub.s32 %v333, %v335
    %v337 = vrot.slane %v323, %v336
    %v338 = vcombine.high %v330, %v330
    %v339 = vcombine.high %v337, %v337
    %348 = vmatprep.subr.mxu0 0.0
    %349 = vmatpush1.msra.mxu0 %v169
    %350 = vmatprep.subr.mxu0 0.0
    %351 = vmatpush1.msra.mxu0 %v170
    %352 = vmatprep.subr.mxu0 0.0
    %353 = vmatpush1.msra.mxu0 %v171
    %354 = vmatprep.subr.mxu0 0.0
    %355 = vmatpush1.msra.mxu0 %v172
    %356 = vmatprep.subr.mxu0 0.0
    %357 = vmatpush1.msra.mxu0 %v173
    %358 = vmatprep.subr.mxu0 0.0
    %359 = vmatpush1.msra.mxu0 %v174
    %360 = vmatprep.subr.mxu0 0.0
    %361 = vmatpush1.msra.mxu0 %v175
    %362 = vmatprep.subr.mxu0 0.0
    %363 = vmatpush1.msra.mxu0 %v176
    %364 = vmatprep.subr.mxu0 0.0
    %365 = vmatpush1.msra.mxu0 %v177
    %366 = vmatprep.subr.mxu0 0.0
    %367 = vmatpush1.msra.mxu0 %v178
    %368 = vmatprep.subr.mxu0 0.0
    %369 = vmatpush1.msra.mxu0 %v179
    %370 = vmatprep.subr.mxu0 0.0
    %371 = vmatpush1.msra.mxu0 %v180
    %372 = vmatprep.subr.mxu0 0.0
    %373 = vmatpush1.msra.mxu0 %v181
    %374 = vmatprep.subr.mxu0 0.0
    %375 = vmatpush1.msra.mxu0 %v182
    %376 = vmatprep.subr.mxu0 0.0
    %377 = vmatpush1.msra.mxu0 %v183
    %378 = vmatprep.subr.mxu0 0.0
    %379 = vmatpush1.msra.mxu0 %v184
    %380 = vmatprep.subr.mxu0 0.0
    %381 = vmatpush1.msra.mxu0 %v185
    %382 = vmatprep.subr.mxu0 0.0
    %383 = vmatpush1.msra.mxu0 %v186
    %384 = vmatprep.subr.mxu0 0.0
    %385 = vmatpush1.msra.mxu0 %v187
    %386 = vmatprep.subr.mxu0 0.0
    %387 = vmatpush1.msra.mxu0 %v188
    %388 = vmatprep.subr.mxu0 0.0
    %389 = vmatpush1.msra.mxu0 %v189
    %390 = vmatprep.subr.mxu0 0.0
    %391 = vmatpush1.msra.mxu0 %v190
    %392 = vmatprep.subr.mxu0 0.0
    %393 = vmatpush1.msra.mxu0 %v191
    %394 = vmatprep.subr.mxu0 0.0
    %395 = vmatpush1.msra.mxu0 %v192
    %396 = vmatprep.subr.mxu0 0.0
    %397 = vmatpush1.msra.mxu0 %v193
    %398 = vmatprep.subr.mxu0 0.0
    %399 = vmatpush1.msra.mxu0 %v194
    %400 = vmatprep.subr.mxu0 0.0
    %401 = vmatpush1.msra.mxu0 %v195
    %402 = vmatprep.subr.mxu0 0.0
    %403 = vmatpush1.msra.mxu0 %v196
    %404 = vmatprep.subr.mxu0 0.0
    %405 = vmatpush1.msra.mxu0 %v197
    %406 = vmatprep.subr.mxu0 0.0
    %407 = vmatpush1.msra.mxu0 %v198
    %408 = vmatprep.subr.mxu0 0.0
    %409 = vmatpush1.msra.mxu0 %v199
    %410 = vmatprep.subr.mxu0 0.0
    %411 = vmatpush1.msra.mxu0 %v200
    %412 = vmatprep.mubr.f32.mxu0 %v321
    %413 = vmatmul.mubr.f32.gmra.mrb[0].mxu0 %v313
    %v414 = vpop.f32.mrb[0].mxu0
    %v415 = vadd.f32 %v302, %v414
    %v416 = vpop.f32.mrb[0].mxu0
    %417 = vdwg.mxu0
    %418 = vmatprep.subr.mxu0 0.0
    %419 = vmatpush1.msra.mxu0 %v201
    %420 = vmatprep.subr.mxu0 0.0
    %421 = vmatpush1.msra.mxu0 %v202
    %422 = vmatprep.subr.mxu0 0.0
    %423 = vmatpush1.msra.mxu0 %v203
    %424 = vmatprep.subr.mxu0 0.0
    %425 = vmatpush1.msra.mxu0 %v204
    %426 = vmatprep.subr.mxu0 0.0
    %427 = vmatpush1.msra.mxu0 %v205
    %428 = vmatprep.subr.mxu0 0.0
    %429 = vmatpush1.msra.mxu0 %v206
    %430 = vmatprep.subr.mxu0 0.0
    %431 = vmatpush1.msra.mxu0 %v207
    %432 = vmatprep.subr.mxu0 0.0
    %433 = vmatpush1.msra.mxu0 %v208
    %434 = vmatprep.subr.mxu0 0.0
    %435 = vmatpush1.msra.mxu0 %v209
    %436 = vmatprep.subr.mxu0 0.0
    %437 = vmatpush1.msra.mxu0 %v210
    %438 = vmatprep.subr.mxu0 0.0
    %439 = vmatpush1.msra.mxu0 %v211
    %440 = vmatprep.subr.mxu0 0.0
    %441 = vmatpush1.msra.mxu0 %v212
    %442 = vmatprep.subr.mxu0 0.0
    %443 = vmatpush1.msra.mxu0 %v213
    %444 = vmatprep.subr.mxu0 0.0
    %445 = vmatpush1.msra.mxu0 %v214
    %446 = vmatprep.subr.mxu0 0.0
    %447 = vmatpush1.msra.mxu0 %v215
    %448 = vmatprep.subr.mxu0 0.0
    %449 = vmatpush1.msra.mxu0 %v216
    %450 = vmatprep.subr.mxu0 0.0
    %451 = vmatpush1.msra.mxu0 %v217
    %452 = vmatprep.subr.mxu0 0.0
    %453 = vmatpush1.msra.mxu0 %v218
    %454 = vmatprep.subr.mxu0 0.0
    %455 = vmatpush1.msra.mxu0 %v219
    %456 = vmatprep.subr.mxu0 0.0
    %457 = vmatpush1.msra.mxu0 %v220
    %458 = vmatprep.subr.mxu0 0.0
    %459 = vmatpush1.msra.mxu0 %v221
    %460 = vmatprep.subr.mxu0 0.0
    %461 = vmatpush1.msra.mxu0 %v222
    %462 = vmatprep.subr.mxu0 0.0
    %463 = vmatpush1.msra.mxu0 %v223
    %464 = vmatprep.subr.mxu0 0.0
    %465 = vmatpush1.msra.mxu0 %v224
    %466 = vmatprep.subr.mxu0 0.0
    %467 = vmatpush1.msra.mxu0 %v225
    %468 = vmatprep.subr.mxu0 0.0
    %469 = vmatpush1.msra.mxu0 %v226
    %470 = vmatprep.subr.mxu0 0.0
    %471 = vmatpush1.msra.mxu0 %v227
    %472 = vmatprep.subr.mxu0 0.0
    %473 = vmatpush1.msra.mxu0 %v228
    %474 = vmatprep.subr.mxu0 0.0
    %475 = vmatpush1.msra.mxu0 %v229
    %476 = vmatprep.subr.mxu0 0.0
    %477 = vmatpush1.msra.mxu0 %v230
    %478 = vmatprep.subr.mxu0 0.0
    %479 = vmatpush1.msra.mxu0 %v231
    %480 = vmatprep.subr.mxu0 0.0
    %481 = vmatpush1.msra.mxu0 %v232
    %482 = vmatprep.mubr.f32.mxu0 %v322
    %483 = vmatmul.mubr.f32.gmra.mrb[0].mxu0 %v320
    %v484 = vpop.f32.mrb[0].mxu0
    %v485 = vadd.f32 %v415, %v484
    %v486 = vpop.f32.mrb[0].mxu0
    %487 = vdwg.mxu0
    %488 = vmatprep.subr.mxu0 0.0
    %489 = vmatpush1.msra.mxu0 %v233
    %490 = vmatprep.subr.mxu0 0.0
    %491 = vmatpush1.msra.mxu0 %v234
    %492 = vmatprep.subr.mxu0 0.0
    %493 = vmatpush1.msra.mxu0 %v235
    %494 = vmatprep.subr.mxu0 0.0
    %495 = vmatpush1.msra.mxu0 %v236
    %496 = vmatprep.subr.mxu0 0.0
    %497 = vmatpush1.msra.mxu0 %v237
    %498 = vmatprep.subr.mxu0 0.0
    %499 = vmatpush1.msra.mxu0 %v238
    %500 = vmatprep.subr.mxu0 0.0
    %501 = vmatpush1.msra.mxu0 %v239
    %502 = vmatprep.subr.mxu0 0.0
    %503 = vmatpush1.msra.mxu0 %v240
    %504 = vmatprep.subr.mxu0 0.0
    %505 = vmatpush1.msra.mxu0 %v241
    %506 = vmatprep.subr.mxu0 0.0
    %507 = vmatpush1.msra.mxu0 %v242
    %508 = vmatprep.subr.mxu0 0.0
    %509 = vmatpush1.msra.mxu0 %v243
    %510 = vmatprep.subr.mxu0 0.0
    %511 = vmatpush1.msra.mxu0 %v244
    %512 = vmatprep.subr.mxu0 0.0
    %513 = vmatpush1.msra.mxu0 %v245
    %514 = vmatprep.subr.mxu0 0.0
    %515 = vmatpush1.msra.mxu0 %v246
    %516 = vmatprep.subr.mxu0 0.0
    %517 = vmatpush1.msra.mxu0 %v247
    %518 = vmatprep.subr.mxu0 0.0
    %519 = vmatpush1.msra.mxu0 %v248
    %520 = vmatprep.subr.mxu0 0.0
    %521 = vmatpush1.msra.mxu0 %v249
    %522 = vmatprep.subr.mxu0 0.0
    %523 = vmatpush1.msra.mxu0 %v250
    %524 = vmatprep.subr.mxu0 0.0
    %525 = vmatpush1.msra.mxu0 %v251
    %526 = vmatprep.subr.mxu0 0.0
    %527 = vmatpush1.msra.mxu0 %v252
    %528 = vmatprep.subr.mxu0 0.0
    %529 = vmatpush1.msra.mxu0 %v253
    %530 = vmatprep.subr.mxu0 0.0
    %531 = vmatpush1.msra.mxu0 %v254
    %532 = vmatprep.subr.mxu0 0.0
    %533 = vmatpush1.msra.mxu0 %v255
    %534 = vmatprep.subr.mxu0 0.0
    %535 = vmatpush1.msra.mxu0 %v256
    %536 = vmatprep.subr.mxu0 0.0
    %537 = vmatpush1.msra.mxu0 %v257
    %538 = vmatprep.subr.mxu0 0.0
    %539 = vmatpush1.msra.mxu0 %v258
    %540 = vmatprep.subr.mxu0 0.0
    %541 = vmatpush1.msra.mxu0 %v259
    %542 = vmatprep.subr.mxu0 0.0
    %543 = vmatpush1.msra.mxu0 %v260
    %544 = vmatprep.subr.mxu0 0.0
    %545 = vmatpush1.msra.mxu0 %v261
    %546 = vmatprep.subr.mxu0 0.0
    %547 = vmatpush1.msra.mxu0 %v262
    %548 = vmatprep.subr.mxu0 0.0
    %549 = vmatpush1.msra.mxu0 %v263
    %550 = vmatprep.subr.mxu0 0.0
    %551 = vmatpush1.msra.mxu0 %v264
    %552 = vmatprep.mubr.f32.mxu0 %v338
    %553 = vmatmul.mubr.f32.gmra.mrb[0].mxu0 %v330
    %v554 = vpop.f32.mrb[0].mxu0
    %v555 = vadd.f32 %v485, %v554
    %v556 = vpop.f32.mrb[0].mxu0
    %557 = vdwg.mxu0
    %558 = vmatprep.subr.mxu0 0.0
    %559 = vmatpush1.msra.mxu0 %v265
    %560 = vmatprep.subr.mxu0 0.0
    %561 = vmatpush1.msra.mxu0 %v266
    %562 = vmatprep.subr.mxu0 0.0
    %563 = vmatpush1.msra.mxu0 %v267
    %564 = vmatprep.subr.mxu0 0.0
    %565 = vmatpush1.msra.mxu0 %v268
    %566 = vmatprep.subr.mxu0 0.0
    %567 = vmatpush1.msra.mxu0 %v269
    %568 = vmatprep.subr.mxu0 0.0
    %569 = vmatpush1.msra.mxu0 %v270
    %570 = vmatprep.subr.mxu0 0.0
    %571 = vmatpush1.msra.mxu0 %v271
    %572 = vmatprep.subr.mxu0 0.0
    %573 = vmatpush1.msra.mxu0 %v272
    %574 = vmatprep.subr.mxu0 0.0
    %575 = vmatpush1.msra.mxu0 %v273
    %576 = vmatprep.subr.mxu0 0.0
    %577 = vmatpush1.msra.mxu0 %v274
    %578 = vmatprep.subr.mxu0 0.0
    %579 = vmatpush1.msra.mxu0 %v275
    %580 = vmatprep.subr.mxu0 0.0
    %581 = vmatpush1.msra.mxu0 %v276
    %582 = vmatprep.subr.mxu0 0.0
    %583 = vmatpush1.msra.mxu0 %v277
    %584 = vmatprep.subr.mxu0 0.0
    %585 = vmatpush1.msra.mxu0 %v278
    %586 = vmatprep.subr.mxu0 0.0
    %587 = vmatpush1.msra.mxu0 %v279
    %588 = vmatprep.subr.mxu0 0.0
    %589 = vmatpush1.msra.mxu0 %v280
    %590 = vmatprep.subr.mxu0 0.0
    %591 = vmatpush1.msra.mxu0 %v281
    %592 = vmatprep.subr.mxu0 0.0
    %593 = vmatpush1.msra.mxu0 %v282
    %594 = vmatprep.subr.mxu0 0.0
    %595 = vmatpush1.msra.mxu0 %v283
    %596 = vmatprep.subr.mxu0 0.0
    %597 = vmatpush1.msra.mxu0 %v284
    %598 = vmatprep.subr.mxu0 0.0
    %599 = vmatpush1.msra.mxu0 %v285
    %600 = vmatprep.subr.mxu0 0.0
    %601 = vmatpush1.msra.mxu0 %v286
    %602 = vmatprep.subr.mxu0 0.0
    %603 = vmatpush1.msra.mxu0 %v287
    %604 = vmatprep.subr.mxu0 0.0
    %605 = vmatpush1.msra.mxu0 %v288
    %606 = vmatprep.subr.mxu0 0.0
    %607 = vmatpush1.msra.mxu0 %v289
    %608 = vmatprep.subr.mxu0 0.0
    %609 = vmatpush1.msra.mxu0 %v290
    %610 = vmatprep.subr.mxu0 0.0
    %611 = vmatpush1.msra.mxu0 %v291
    %612 = vmatprep.subr.mxu0 0.0
    %613 = vmatpush1.msra.mxu0 %v292
    %614 = vmatprep.subr.mxu0 0.0
    %615 = vmatpush1.msra.mxu0 %v293
    %616 = vmatprep.subr.mxu0 0.0
    %617 = vmatpush1.msra.mxu0 %v294
    %618 = vmatprep.subr.mxu0 0.0
    %619 = vmatpush1.msra.mxu0 %v295
    %620 = vmatprep.subr.mxu0 0.0
    %621 = vmatpush1.msra.mxu0 %v296
    %622 = vmatprep.mubr.f32.mxu0 %v339
    %623 = vmatmul.mubr.f32.gmra.mrb[0].mxu0 %v337
    %v624 = vpop.f32.mrb[0].mxu0
    %v625 = vadd.f32 %v555, %v624
    %v626 = vpop.f32.mrb[0].mxu0
    %627 = vdwg.mxu0
    %v628 = vmax.f32 %v625, 0.0
    %vm629 = vcmask 517120
    %v630 = vsel %vm629, %v628, 0.0
    %631 = vadd.xlane.f32.xlu0 %v630
    %v632 = vpop.xlane.xlu0 %631
    %v633 = vrcp.pop 64.0
    %v634 = vmul.f32 %v632, %v633
    %v635 = vsub.f32 %v628, %v634
    %v636 = vmul.f32 %v635, %v635
    %v637 = vsel %vm629, %v636, 0.0
    %638 = vadd.xlane.f32.xlu0 %v637
    %v639 = vpop.xlane.xlu0 %638
    %v640 = vmul.f32 %v639, %v633
    %v641 = vadd.f32 %v640, 1e-05
    %v642 = vrsqrt.pop %v641
    %v643 = vmul.f32 %v635, %v642
    %v644 = vld [vmem:[%s3] sm:$0x1]
    %v646 = vlaneseq
    %v647 = vshrl.u32 %v646, 7
    %v648 = vsub.s32 0, %v647
    %v649 = vrot.slane %v644, %v648
    %v651 = vmul.f32 %v643, %v649
    %v652 = vld [vmem:[%s4] sm:$0x1]
    %v654 = vlaneseq
    %v655 = vshrl.u32 %v654, 7
    %v656 = vsub.s32 0, %v655
    %v657 = vrot.slane %v652, %v656
    %v659 = vadd.f32 %v651, %v657
    %v660 = vld [vmem:[%s5] sm:$0xf]
    %v661 = vld [vmem:[%s5 + $0x4] sm:$0xf]
    %v662 = vld [vmem:[%s5 + $0x8] sm:$0xf]
    %v663 = vld [vmem:[%s5 + $0xc] sm:$0xf]
    %v664 = vld [vmem:[%s5 + $0x10] sm:$0xf]
    %v665 = vld [vmem:[%s5 + $0x14] sm:$0xf]
    %v666 = vld [vmem:[%s5 + $0x18] sm:$0xf]
    %v667 = vld [vmem:[%s5 + $0x1c] sm:$0xf]
    %v668 = vunpack.c.l.bf16 %v660
    %v669 = vunpack.c.l.bf16 %v661
    %v670 = vunpack.c.l.bf16 %v662
    %v671 = vunpack.c.l.bf16 %v663
    %v672 = vunpack.c.l.bf16 %v664
    %v673 = vunpack.c.l.bf16 %v665
    %v674 = vunpack.c.l.bf16 %v666
    %v675 = vunpack.c.l.bf16 %v667
    %v676 = vld [vmem:[%s6] sm:$0x1]
    %v678 = vlaneseq
    %v679 = vshrl.u32 %v678, 7
    %v680 = vsub.s32 0, %v679
    %v681 = vrot.slane %v676, %v680
    %vm683 = vcmask 523264
    %v685 = vsel %vm683, %v659, 0
    %687 = vmatprep.subr.mxu0 0.0
    %688 = vmatpush1.msra.mxu0 %v668
    %689 = vmatprep.subr.mxu0 0.0
    %690 = vmatpush1.msra.mxu0 %v669
    %691 = vmatprep.subr.mxu0 0.0
    %692 = vmatpush1.msra.mxu0 %v670
    %693 = vmatprep.subr.mxu0 0.0
    %694 = vmatpush1.msra.mxu0 %v671
    %695 = vmatprep.subr.mxu0 0.0
    %696 = vmatpush1.msra.mxu0 %v672
    %697 = vmatprep.subr.mxu0 0.0
    %698 = vmatpush1.msra.mxu0 %v673
    %699 = vmatprep.subr.mxu0 0.0
    %700 = vmatpush1.msra.mxu0 %v674
    %701 = vmatprep.subr.mxu0 0.0
    %702 = vmatpush1.msra.mxu0 %v675
    %703 = vmatprep.subr.mxu0 0.0
    %704 = vmatpush1.msra.mxu0 0.0
    %705 = vmatprep.subr.mxu0 0.0
    %706 = vmatpush1.msra.mxu0 0.0
    %707 = vmatprep.subr.mxu0 0.0
    %708 = vmatpush1.msra.mxu0 0.0
    %709 = vmatprep.subr.mxu0 0.0
    %710 = vmatpush1.msra.mxu0 0.0
    %711 = vmatprep.subr.mxu0 0.0
    %712 = vmatpush1.msra.mxu0 0.0
    %713 = vmatprep.subr.mxu0 0.0
    %714 = vmatpush1.msra.mxu0 0.0
    %715 = vmatprep.subr.mxu0 0.0
    %716 = vmatpush1.msra.mxu0 0.0
    %717 = vmatprep.subr.mxu0 0.0
    %718 = vmatpush1.msra.mxu0 0.0
    %719 = vmatprep.subr.mxu0 0.0
    %720 = vmatpush1.msra.mxu0 0.0
    %721 = vmatprep.subr.mxu0 0.0
    %722 = vmatpush1.msra.mxu0 0.0
    %723 = vmatprep.subr.mxu0 0.0
    %724 = vmatpush1.msra.mxu0 0.0
    %725 = vmatprep.subr.mxu0 0.0
    %726 = vmatpush1.msra.mxu0 0.0
    %727 = vmatprep.subr.mxu0 0.0
    %728 = vmatpush1.msra.mxu0 0.0
    %729 = vmatprep.subr.mxu0 0.0
    %730 = vmatpush1.msra.mxu0 0.0
    %731 = vmatprep.subr.mxu0 0.0
    %732 = vmatpush1.msra.mxu0 0.0
    %733 = vmatprep.subr.mxu0 0.0
    %734 = vmatpush1.msra.mxu0 0.0
    %735 = vmatprep.subr.mxu0 0.0
    %736 = vmatpush1.msra.mxu0 0.0
    %737 = vmatprep.subr.mxu0 0.0
    %738 = vmatpush1.msra.mxu0 0.0
    %739 = vmatprep.subr.mxu0 0.0
    %740 = vmatpush1.msra.mxu0 0.0
    %741 = vmatprep.subr.mxu0 0.0
    %742 = vmatpush1.msra.mxu0 0.0
    %743 = vmatprep.subr.mxu0 0.0
    %744 = vmatpush1.msra.mxu0 0.0
    %745 = vmatprep.subr.mxu0 0.0
    %746 = vmatpush1.msra.mxu0 0.0
    %747 = vmatprep.subr.mxu0 0.0
    %748 = vmatpush1.msra.mxu0 0.0
    %749 = vmatprep.subr.mxu0 0.0
    %750 = vmatpush1.msra.mxu0 0.0
    %751 = vmatprep.mubr.f32.mxu0 0.0
    %752 = vmatmul.mubr.f32.gmra.mrb[0].mxu0 %v685
    %v753 = vpop.f32.mrb[0].mxu0
    %v754 = vadd.f32 %v681, %v753
    %v755 = vpop.f32.mrb[0].mxu0
    %756 = vdwg.mxu0
    %v757 = vmax.f32 %v754, 0.0
    %v758 = vsel %vm629, %v757, 0.0
    %759 = vadd.xlane.f32.xlu0 %v758
    %v760 = vpop.xlane.xlu0 %759
    %v761 = vmul.f32 %v760, %v633
    %v762 = vsub.f32 %v757, %v761
    %v763 = vmul.f32 %v762, %v762
    %v764 = vsel %vm629, %v763, 0.0
    %765 = vadd.xlane.f32.xlu0 %v764
    %v766 = vpop.xlane.xlu0 %765
    %v767 = vmul.f32 %v766, %v633
    %v768 = vadd.f32 %v767, 1e-05
    %v769 = vrsqrt.pop %v768
    %v770 = vmul.f32 %v762, %v769
    %v771 = vld [vmem:[%s7] sm:$0x1]
    %v773 = vlaneseq
    %v774 = vshrl.u32 %v773, 7
    %v775 = vsub.s32 0, %v774
    %v776 = vrot.slane %v771, %v775
    %v778 = vmul.f32 %v770, %v776
    %v779 = vld [vmem:[%s8] sm:$0x1]
    %v781 = vlaneseq
    %v782 = vshrl.u32 %v781, 7
    %v783 = vsub.s32 0, %v782
    %v784 = vrot.slane %v779, %v783
    %v786 = vadd.f32 %v778, %v784
    %v787 = vld [vmem:[%s9] sm:$0xf]
    %v788 = vld [vmem:[%s9 + $0x4] sm:$0xf]
    %v789 = vld [vmem:[%s9 + $0x8] sm:$0xf]
    %v790 = vld [vmem:[%s9 + $0xc] sm:$0xf]
    %v791 = vld [vmem:[%s9 + $0x10] sm:$0xf]
    %v792 = vld [vmem:[%s9 + $0x14] sm:$0xf]
    %v793 = vld [vmem:[%s9 + $0x18] sm:$0xf]
    %v794 = vld [vmem:[%s9 + $0x1c] sm:$0xf]
    %v795 = vunpack.c.l.bf16 %v787
    %v796 = vunpack.c.l.bf16 %v788
    %v797 = vunpack.c.l.bf16 %v789
    %v798 = vunpack.c.l.bf16 %v790
    %v799 = vunpack.c.l.bf16 %v791
    %v800 = vunpack.c.l.bf16 %v792
    %v801 = vunpack.c.l.bf16 %v793
    %v802 = vunpack.c.l.bf16 %v794
    %v803 = vld [vmem:[%s10] sm:$0x1]
    %v805 = vlaneseq
    %v806 = vshrl.u32 %v805, 7
    %v807 = vsub.s32 0, %v806
    %v808 = vrot.slane %v803, %v807
    %v811 = vsel %vm683, %v786, 0
    %813 = vmatprep.subr.mxu0 0.0
    %814 = vmatpush1.msra.mxu0 %v795
    %815 = vmatprep.subr.mxu0 0.0
    %816 = vmatpush1.msra.mxu0 %v796
    %817 = vmatprep.subr.mxu0 0.0
    %818 = vmatpush1.msra.mxu0 %v797
    %819 = vmatprep.subr.mxu0 0.0
    %820 = vmatpush1.msra.mxu0 %v798
    %821 = vmatprep.subr.mxu0 0.0
    %822 = vmatpush1.msra.mxu0 %v799
    %823 = vmatprep.subr.mxu0 0.0
    %824 = vmatpush1.msra.mxu0 %v800
    %825 = vmatprep.subr.mxu0 0.0
    %826 = vmatpush1.msra.mxu0 %v801
    %827 = vmatprep.subr.mxu0 0.0
    %828 = vmatpush1.msra.mxu0 %v802
    %829 = vmatprep.subr.mxu0 0.0
    %830 = vmatpush1.msra.mxu0 0.0
    %831 = vmatprep.subr.mxu0 0.0
    %832 = vmatpush1.msra.mxu0 0.0
    %833 = vmatprep.subr.mxu0 0.0
    %834 = vmatpush1.msra.mxu0 0.0
    %835 = vmatprep.subr.mxu0 0.0
    %836 = vmatpush1.msra.mxu0 0.0
    %837 = vmatprep.subr.mxu0 0.0
    %838 = vmatpush1.msra.mxu0 0.0
    %839 = vmatprep.subr.mxu0 0.0
    %840 = vmatpush1.msra.mxu0 0.0
    %841 = vmatprep.subr.mxu0 0.0
    %842 = vmatpush1.msra.mxu0 0.0
    %843 = vmatprep.subr.mxu0 0.0
    %844 = vmatpush1.msra.mxu0 0.0
    %845 = vmatprep.subr.mxu0 0.0
    %846 = vmatpush1.msra.mxu0 0.0
    %847 = vmatprep.subr.mxu0 0.0
    %848 = vmatpush1.msra.mxu0 0.0
    %849 = vmatprep.subr.mxu0 0.0
    %850 = vmatpush1.msra.mxu0 0.0
    %851 = vmatprep.subr.mxu0 0.0
    %852 = vmatpush1.msra.mxu0 0.0
    %853 = vmatprep.subr.mxu0 0.0
    %854 = vmatpush1.msra.mxu0 0.0
    %855 = vmatprep.subr.mxu0 0.0
    %856 = vmatpush1.msra.mxu0 0.0
    %857 = vmatprep.subr.mxu0 0.0
    %858 = vmatpush1.msra.mxu0 0.0
    %859 = vmatprep.subr.mxu0 0.0
    %860 = vmatpush1.msra.mxu0 0.0
    %861 = vmatprep.subr.mxu0 0.0
    %862 = vmatpush1.msra.mxu0 0.0
    %863 = vmatprep.subr.mxu0 0.0
    %864 = vmatpush1.msra.mxu0 0.0
    %865 = vmatprep.subr.mxu0 0.0
    %866 = vmatpush1.msra.mxu0 0.0
    %867 = vmatprep.subr.mxu0 0.0
    %868 = vmatpush1.msra.mxu0 0.0
    %869 = vmatprep.subr.mxu0 0.0
    %870 = vmatpush1.msra.mxu0 0.0
    %871 = vmatprep.subr.mxu0 0.0
    %872 = vmatpush1.msra.mxu0 0.0
    %873 = vmatprep.subr.mxu0 0.0
    %874 = vmatpush1.msra.mxu0 0.0
    %875 = vmatprep.subr.mxu0 0.0
    %876 = vmatpush1.msra.mxu0 0.0
    %877 = vmatprep.mubr.f32.mxu0 0.0
    %878 = vmatmul.mubr.f32.gmra.mrb[0].mxu0 %v811
    %v879 = vpop.f32.mrb[0].mxu0
    %v880 = vadd.f32 %v808, %v879
    %v881 = vpop.f32.mrb[0].mxu0
    %882 = vdwg.mxu0
    %v883 = vmul.f32 %v880, 2.0
    %vm884 = vcmask 25600
    %v885 = vsel %vm884, %v883, -inf
    %886 = vmax.xlane.f32.xlu0 %v885
    %v887 = vpop.xlane.xlu0 %886
    %v888 = vsub.f32 %v883, %v887
    %v889 = vmul.f32 %v888, 1.442695
    %v890 = vpow.pop %v889
    %v891 = vsel %vm884, %v890, 0.0
    %892 = vadd.xlane.f32.xlu0 %v891
    %v893 = vpop.xlane.xlu0 %892
    %v894 = vrcp.pop %v893
    %v895 = vmul.f32 %v890, %v894
    %896 = vst.msk [vmem:[#allocation2] sm:$0x3] %vm884, %v895
    // Predicated region
    $region46: #{_lambda_.1} parent=1 // pred_check
      _
    $region47: #{_lambda_.1} parent=1 // pred_check_branch
      %898 = sbr.rel (0) target = $region49
    $region48: #{_lambda_.1} parent=1 // pred_region
      %s900 = ssub.s32 32, 32
      %901 = vsyncadd [#allocation3], %s900
      %s903 = sshll.u32 [#allocation2], 4
      %s904 = int_to_ptr.vmem [resolvable:$true] %s903
      %906 = dma.vmem_to_hbm [thread:$0]  %s904, 32, %s11, [#allocation3]
    $region49: #{_lambda_.1} parent=1 // pred_fallthru
      _
    // Predicated region
    $region50: #{_lambda_.1} parent=1 // pred_check
      _
    $region51: #{_lambda_.1} parent=1 // pred_check_branch
      %908 = sbr.rel (0) target = $region53
    $region52: #{_lambda_.1} parent=1 // pred_region
      %909 = dma.done [#allocation3], 32
    $region53: #{_lambda_.1} parent=1 // pred_fallthru
      _
    %910 = vsyncpa [#allocation3], 1

</llo_original>
